<compile_context>
chip_gen: v7x
topology: tpu7x:2x2x1
jax: 0.10.0
libtpu: 0.0.40
codegen_flags: <defaults>
</compile_context>

<pallas_src>
import jax
import jax.numpy as jnp
from jax.experimental import pallas as pl
from jax.experimental.pallas import tpu as pltpu


def _round_up(a, m):
    return ((a + m - 1) // m) * m


def _cdiv(a, m):
    return -(-a // m)


def _eppm_kernel(m_ref, d_ref, x_ref, o_ref):
    """One (batch b, node-chunk n) tile.

    x_ref / o_ref blocks: (1, 3, TR, 128) -- coordinate-major, (TR, 128)-dense
    node planes. m_ref: (B*9,) f32 SMEM (row-major 3x3 per batch);
    d_ref: (B*3,) f32 SMEM.
    """
    b = pl.program_id(0)
    mb = b * 9
    db = b * 3

    # Per-batch affine map, read as SMEM scalars (broadcast on the VPU).
    m00 = m_ref[mb + 0]; m01 = m_ref[mb + 1]; m02 = m_ref[mb + 2]
    m10 = m_ref[mb + 3]; m11 = m_ref[mb + 4]; m12 = m_ref[mb + 5]
    m20 = m_ref[mb + 6]; m21 = m_ref[mb + 7]; m22 = m_ref[mb + 8]
    d0 = d_ref[db + 0]; d1 = d_ref[db + 1]; d2 = d_ref[db + 2]

    # Dense (TR, 128) coordinate planes -- full sublane/lane occupancy.
    x0 = x_ref[0, 0]
    x1 = x_ref[0, 1]
    x2 = x_ref[0, 2]

    # out = M_b @ x + d_b  (9 scalar*vector FMAs + 3 adds per node), one
    # direct, unmasked store per coordinate plane.
    o_ref[0, 0] = m00 * x0 + m01 * x1 + m02 * x2 + d0
    o_ref[0, 1] = m10 * x0 + m11 * x1 + m12 * x2 + d1
    o_ref[0, 2] = m20 * x0 + m21 * x1 + m22 * x2 + d2


def _wc_net(params):
    """wc_net MLP in plain JAX (tiny; not worth a kernel launch)."""
    wc = params["wc"].astype(jnp.float32)                 # (C,)
    h = wc @ params["wc_w1"].T                            # (10,)
    h = h * jax.nn.sigmoid(h)                             # SiLU
    logits = h @ params["wc_w2"].T                        # (C,)
    return jax.nn.softmax(logits)                         # (C,)


def eppm_forward(params, x, x_attr, e, e_attr, v=None):
    """EPPM.forward. x: (B*N, 3). Returns (B*N, 3).

    x_attr / e / e_attr / v are only consumed by the undefined submodules
    (Embedding / GT) -> unused in this reference path.
    """
    B = params["B"]
    R = params["R"].astype(jnp.float32)                   # (C, B, 3, 3)
    t = params["t"].astype(jnp.float32)                   # (C, B, 1, 3)
    N = x.shape[0] // B

    w = _wc_net(params)                                   # (C,)

    # --- channel collapse (exact while the EMB/GT stage is identity) -------
    # out_b(n) = sum_c w_c [ R_cb^T R_cb (x_bn + t_cb) - t_cb ]
    #          = M_b x_bn + d_b
    RtR = jnp.einsum("cbki,cbkj->cbij", R, R)              # R^T R   (C,B,3,3)
    M = jnp.einsum("c,cbij->bij", w, RtR)                  # (B,3,3)
    tv = t[:, :, 0, :]                                     # (C,B,3)
    d = jnp.einsum("c,cbi->bi", w,
                   jnp.einsum("cbij,cbj->cbi", RtR, tv) - tv)   # (B,3)
    m_flat = M.reshape(-1)                                 # (B*9,)
    d_flat = d.reshape(-1)                                 # (B*3,)

    # --- (8,128)-dense, coordinate-major layout -----------------------------
    LANE, SUB, TR_MAX = 128, 8, 32                          # <= 4096 nodes/block
    rows = max(1, _cdiv(N, LANE))
    num_chunks = _cdiv(rows, TR_MAX)
    TR = _round_up(_cdiv(rows, num_chunks), SUB)
    rows_p = num_chunks * TR
    Np = rows_p * LANE

    # TODO(synk): callers that can produce/consume coordinate-major (B,3,N)
    # directly would avoid these wrapper transposes (they dominate once the
    # kernel itself is at the HBM roofline).
    xT = jnp.transpose(x.reshape(B, N, 3).astype(jnp.float32), (0, 2, 1))  # (B,3,N)
    if Np != N:
        xT = jnp.pad(xT, ((0, 0), (0, 0), (0, Np - N)))
    x4 = xT.reshape(B, 3, rows_p, LANE)                    # (B,3,rows_p,128)

    out = pl.pallas_call(
        _eppm_kernel,
        out_shape=jax.ShapeDtypeStruct((B, 3, rows_p, LANE), jnp.float32),
        grid=(B, num_chunks),
        in_specs=[
            pl.BlockSpec(memory_space=pltpu.MemorySpace.SMEM),        # M flat (B*9,)
            pl.BlockSpec(memory_space=pltpu.MemorySpace.SMEM),        # d flat (B*3,)
            pl.BlockSpec((1, 3, TR, LANE), lambda b, n: (b, 0, n, 0)),  # x
        ],
        out_specs=pl.BlockSpec((1, 3, TR, LANE), lambda b, n: (b, 0, n, 0)),
        compiler_params=pltpu.CompilerParams(
            dimension_semantics=("parallel", "parallel")),
    )(m_flat, d_flat, x4)

    # Drop padded lanes (they hold d_b, not zeros), back to (B*N, 3).
    out3 = out.reshape(B, 3, Np)[:, :, :N]
    return jnp.transpose(out3, (0, 2, 1)).reshape(-1, 3)


if __name__ == "__main__":
    key = jax.random.PRNGKey(0)
    B, N, C, E = 2, 8, 4, 12          # batch, nodes/graph, channel_size, edges/graph
    FX, FE = 16, 8                    # node / edge attribute widths

    ks = jax.random.split(key, 10)
    x      = jax.random.normal(ks[0], (B * N, 3), jnp.float32)
    x_attr = jax.random.normal(ks[1], (B * N, FX), jnp.float32)
    e      = jax.random.randint(ks[2], (2, B * E), 0, N)
    e_attr = jax.random.normal(ks[3], (B * E, FE), jnp.float32)
    v      = jax.random.normal(ks[4], (B * N, 3), jnp.float32)

    params = {
        "B": B,
        # wc buffer + wc_net weights (Linear(C,10,bias=False), Linear(10,C,bias=False))
        "wc":    jax.random.uniform(ks[5], (C,), jnp.float32),
        "wc_w1": jax.random.normal(ks[6], (10, C), jnp.float32) * 0.1,
        "wc_w2": jax.random.normal(ks[7], (C, 10), jnp.float32) * 0.1,
        # deterministic stand-ins for the RotoTrans outputs (see TODO above)
        "R": jax.random.normal(ks[8], (C, B, 3, 3), jnp.float32),
        "t": jax.random.normal(ks[9], (C, B, 1, 3), jnp.float32),
    }

    out = eppm_forward(params, x, x_attr, e, e_attr, v)
    jax.block_until_ready(out)
    assert out.shape == (B * N, 3) and out.dtype == jnp.float32

    # Plain-JAX per-channel reference of the same math (GT stage = identity
    # stand-in).  Also validates that the channel collapse is exact.
    w_ref = _wc_net(params)                                              # (C,)
    x3 = x.reshape(B, N, 3)
    xt = x3[None] + params["t"]                                          # (C,B,N,3)
    xr = jnp.einsum("cbij,cbnj->cbni", params["R"], xt)                  # R @ (x+t)
    back = jnp.einsum("cbji,cbnj->cbni", params["R"], xr) - params["t"]  # R^T @ y - t
    ref = (w_ref[:, None, None, None] * back).sum(0).reshape(-1, 3)
    assert jnp.allclose(out, ref, atol=1e-4, rtol=1e-4), "mismatch vs reference"

    print("KERNEL_OK")
</pallas_src>

<mosaic_0001>
module attributes {stable_mosaic.version = 11 : i64} {
  func.func @_eppm_kernel(%arg0: i32, %arg1: i32, %arg2: memref<18xf32, #tpu.memory_space<smem>>, %arg3: memref<6xf32, #tpu.memory_space<smem>>, %arg4: memref<1x3x8x128xf32, #tpu.memory_space<vmem>>, %arg5: memref<1x3x8x128xf32, #tpu.memory_space<vmem>>) attributes {dimension_semantics = [#tpu.dimension_semantics<parallel>, #tpu.dimension_semantics<parallel>], iteration_bounds = array<i64: 2, 1>, scalar_prefetch = 0 : i64, scratch_operands = 0 : i64, tpu.core_type = #tpu.core_type<tc>, window_params = [{transform_indices = @transform_0, window_bounds = array<i64: 18>}, {transform_indices = @transform_1, window_bounds = array<i64: 6>}, {transform_indices = @transform_2, window_bounds = array<i64: 1, 3, 8, 128>}, {transform_indices = @transform_3, window_bounds = array<i64: 1, 3, 8, 128>}]} {
    %c9_i32 = arith.constant 9 : i32
    %0 = arith.muli %arg0, %c9_i32 : i32
    %c3_i32 = arith.constant 3 : i32
    %1 = arith.muli %arg0, %c3_i32 : i32
    %c0_i32 = arith.constant 0 : i32
    %2 = arith.addi %0, %c0_i32 : i32
    %3 = arith.index_cast %2 : i32 to index
    %4 = memref.load %arg2[%3] : memref<18xf32, #tpu.memory_space<smem>>
    %c1_i32 = arith.constant 1 : i32
    %5 = arith.addi %0, %c1_i32 : i32
    %6 = arith.index_cast %5 : i32 to index
    %7 = memref.load %arg2[%6] : memref<18xf32, #tpu.memory_space<smem>>
    %c2_i32 = arith.constant 2 : i32
    %8 = arith.addi %0, %c2_i32 : i32
    %9 = arith.index_cast %8 : i32 to index
    %10 = memref.load %arg2[%9] : memref<18xf32, #tpu.memory_space<smem>>
    %c3_i32_0 = arith.constant 3 : i32
    %11 = arith.addi %0, %c3_i32_0 : i32
    %12 = arith.index_cast %11 : i32 to index
    %13 = memref.load %arg2[%12] : memref<18xf32, #tpu.memory_space<smem>>
    %c4_i32 = arith.constant 4 : i32
    %14 = arith.addi %0, %c4_i32 : i32
    %15 = arith.index_cast %14 : i32 to index
    %16 = memref.load %arg2[%15] : memref<18xf32, #tpu.memory_space<smem>>
    %c5_i32 = arith.constant 5 : i32
    %17 = arith.addi %0, %c5_i32 : i32
    %18 = arith.index_cast %17 : i32 to index
    %19 = memref.load %arg2[%18] : memref<18xf32, #tpu.memory_space<smem>>
    %c6_i32 = arith.constant 6 : i32
    %20 = arith.addi %0, %c6_i32 : i32
    %21 = arith.index_cast %20 : i32 to index
    %22 = memref.load %arg2[%21] : memref<18xf32, #tpu.memory_space<smem>>
    %c7_i32 = arith.constant 7 : i32
    %23 = arith.addi %0, %c7_i32 : i32
    %24 = arith.index_cast %23 : i32 to index
    %25 = memref.load %arg2[%24] : memref<18xf32, #tpu.memory_space<smem>>
    %c8_i32 = arith.constant 8 : i32
    %26 = arith.addi %0, %c8_i32 : i32
    %27 = arith.index_cast %26 : i32 to index
    %28 = memref.load %arg2[%27] : memref<18xf32, #tpu.memory_space<smem>>
    %c0_i32_1 = arith.constant 0 : i32
    %29 = arith.addi %1, %c0_i32_1 : i32
    %30 = arith.index_cast %29 : i32 to index
    %31 = memref.load %arg3[%30] : memref<6xf32, #tpu.memory_space<smem>>
    %c1_i32_2 = arith.constant 1 : i32
    %32 = arith.addi %1, %c1_i32_2 : i32
    %33 = arith.index_cast %32 : i32 to index
    %34 = memref.load %arg3[%33] : memref<6xf32, #tpu.memory_space<smem>>
    %c2_i32_3 = arith.constant 2 : i32
    %35 = arith.addi %1, %c2_i32_3 : i32
    %36 = arith.index_cast %35 : i32 to index
    %37 = memref.load %arg3[%36] : memref<6xf32, #tpu.memory_space<smem>>
    %c0 = arith.constant 0 : index
    %c0_4 = arith.constant 0 : index
    %c0_5 = arith.constant 0 : index
    %c0_6 = arith.constant 0 : index
    %38 = vector.load %arg4[%c0, %c0_4, %c0_5, %c0_6] : memref<1x3x8x128xf32, #tpu.memory_space<vmem>>, vector<1x1x8x128xf32>
    %39 = vector.shape_cast %38 : vector<1x1x8x128xf32> to vector<8x128xf32>
    %c0_7 = arith.constant 0 : index
    %c1 = arith.constant 1 : index
    %c0_8 = arith.constant 0 : index
    %c0_9 = arith.constant 0 : index
    %40 = vector.load %arg4[%c0_7, %c1, %c0_8, %c0_9] : memref<1x3x8x128xf32, #tpu.memory_space<vmem>>, vector<1x1x8x128xf32>
    %41 = vector.shape_cast %40 : vector<1x1x8x128xf32> to vector<8x128xf32>
    %c0_10 = arith.constant 0 : index
    %c2 = arith.constant 2 : index
    %c0_11 = arith.constant 0 : index
    %c0_12 = arith.constant 0 : index
    %42 = vector.load %arg4[%c0_10, %c2, %c0_11, %c0_12] : memref<1x3x8x128xf32, #tpu.memory_space<vmem>>, vector<1x1x8x128xf32>
    %43 = vector.shape_cast %42 : vector<1x1x8x128xf32> to vector<8x128xf32>
    %44 = vector.broadcast %4 : f32 to vector<8x128xf32>
    %45 = arith.mulf %44, %39 : vector<8x128xf32>
    %46 = vector.broadcast %7 : f32 to vector<8x128xf32>
    %47 = arith.mulf %46, %41 : vector<8x128xf32>
    %48 = arith.addf %45, %47 : vector<8x128xf32>
    %49 = vector.broadcast %10 : f32 to vector<8x128xf32>
    %50 = arith.mulf %49, %43 : vector<8x128xf32>
    %51 = arith.addf %48, %50 : vector<8x128xf32>
    %52 = vector.broadcast %31 : f32 to vector<8x128xf32>
    %53 = arith.addf %51, %52 : vector<8x128xf32>
    %c0_13 = arith.constant 0 : index
    %c0_14 = arith.constant 0 : index
    %c0_15 = arith.constant 0 : index
    %c0_16 = arith.constant 0 : index
    %54 = vector.load %arg5[%c0_13, %c0_14, %c0_15, %c0_16] : memref<1x3x8x128xf32, #tpu.memory_space<vmem>>, vector<1x1x8x128xf32>
    %55 = vector.shape_cast %54 : vector<1x1x8x128xf32> to vector<8x128xf32>
    %56 = vector.shape_cast %53 : vector<8x128xf32> to vector<1x1x8x128xf32>
    tpu.vector_store %arg5[%c0_13, %c0_14, %c0_15, %c0_16], %56 {strides = array<i32>} : memref<1x3x8x128xf32, #tpu.memory_space<vmem>>, vector<1x1x8x128xf32>,
    %57 = vector.broadcast %13 : f32 to vector<8x128xf32>
    %58 = arith.mulf %57, %39 : vector<8x128xf32>
    %59 = vector.broadcast %16 : f32 to vector<8x128xf32>
    %60 = arith.mulf %59, %41 : vector<8x128xf32>
    %61 = arith.addf %58, %60 : vector<8x128xf32>
    %62 = vector.broadcast %19 : f32 to vector<8x128xf32>
    %63 = arith.mulf %62, %43 : vector<8x128xf32>
    %64 = arith.addf %61, %63 : vector<8x128xf32>
    %65 = vector.broadcast %34 : f32 to vector<8x128xf32>
    %66 = arith.addf %64, %65 : vector<8x128xf32>
    %c0_17 = arith.constant 0 : index
    %c1_18 = arith.constant 1 : index
    %c0_19 = arith.constant 0 : index
    %c0_20 = arith.constant 0 : index
    %67 = vector.load %arg5[%c0_17, %c1_18, %c0_19, %c0_20] : memref<1x3x8x128xf32, #tpu.memory_space<vmem>>, vector<1x1x8x128xf32>
    %68 = vector.shape_cast %67 : vector<1x1x8x128xf32> to vector<8x128xf32>
    %69 = vector.shape_cast %66 : vector<8x128xf32> to vector<1x1x8x128xf32>
    tpu.vector_store %arg5[%c0_17, %c1_18, %c0_19, %c0_20], %69 {strides = array<i32>} : memref<1x3x8x128xf32, #tpu.memory_space<vmem>>, vector<1x1x8x128xf32>,
    %70 = vector.broadcast %22 : f32 to vector<8x128xf32>
    %71 = arith.mulf %70, %39 : vector<8x128xf32>
    %72 = vector.broadcast %25 : f32 to vector<8x128xf32>
    %73 = arith.mulf %72, %41 : vector<8x128xf32>
    %74 = arith.addf %71, %73 : vector<8x128xf32>
    %75 = vector.broadcast %28 : f32 to vector<8x128xf32>
    %76 = arith.mulf %75, %43 : vector<8x128xf32>
    %77 = arith.addf %74, %76 : vector<8x128xf32>
    %78 = vector.broadcast %37 : f32 to vector<8x128xf32>
    %79 = arith.addf %77, %78 : vector<8x128xf32>
    %c0_21 = arith.constant 0 : index
    %c2_22 = arith.constant 2 : index
    %c0_23 = arith.constant 0 : index
    %c0_24 = arith.constant 0 : index
    %80 = vector.load %arg5[%c0_21, %c2_22, %c0_23, %c0_24] : memref<1x3x8x128xf32, #tpu.memory_space<vmem>>, vector<1x1x8x128xf32>
    %81 = vector.shape_cast %80 : vector<1x1x8x128xf32> to vector<8x128xf32>
    %82 = vector.shape_cast %79 : vector<8x128xf32> to vector<1x1x8x128xf32>
    tpu.vector_store %arg5[%c0_21, %c2_22, %c0_23, %c0_24], %82 {strides = array<i32>} : memref<1x3x8x128xf32, #tpu.memory_space<vmem>>, vector<1x1x8x128xf32>,
    return
  }
  func.func @transform_0(%arg0: i32, %arg1: i32) -> i32 {
    %c0_i32 = arith.constant 0 : i32
    %c0_i32_0 = arith.constant 0 : i32
    return %c0_i32 : i32
  }
  func.func @transform_1(%arg0: i32, %arg1: i32) -> i32 {
    %c0_i32 = arith.constant 0 : i32
    %c0_i32_0 = arith.constant 0 : i32
    return %c0_i32 : i32
  }
  func.func @transform_2(%arg0: i32, %arg1: i32) -> (i32, i32, i32, i32) {
    %c0_i32 = arith.constant 0 : i32
    %c0_i32_0 = arith.constant 0 : i32
    %c0_i32_1 = arith.constant 0 : i32
    return %arg0, %c0_i32, %arg1, %c0_i32_0 : i32, i32, i32, i32
  }
  func.func @transform_3(%arg0: i32, %arg1: i32) -> (i32, i32, i32, i32) {
    %c0_i32 = arith.constant 0 : i32
    %c0_i32_0 = arith.constant 0 : i32
    %c0_i32_1 = arith.constant 0 : i32
    return %arg0, %c0_i32, %arg1, %c0_i32_0 : i32, i32, i32, i32
  }
}

</mosaic_0001>

<llo_original>
// kernel: tpu_custom_call.1
$region0: #{tpu_custom_call.1}
  #allocation0 [shape = 'u32[]', space=smem, size = 0x4, offset = 0x4, fixed_abs, tag = 'smem constant byte address 0x4 - core index']
  #allocation1 [shape = 'u32[144,128]{1,0:T(1,128)}', space=vmem, size = 0x12000, scoped, tag = 'internal scratch']
  %s0 = inlined_call_operand.hbm [shape: f32[18], index: 0, kind: input, shape index: {}]
  %s1 = inlined_call_operand.vmem [shape: f32[6], index: 1, kind: input, shape index: {}]
  %s2 = inlined_call_operand.hbm [shape: f32[2,3,8,128], index: 2, kind: input, shape index: {}]
  %s3 = inlined_call_operand.hbm [shape: f32[2,3,8,128], index: 3, kind: output, shape index: {}]
  %s4 = sld [smem:[#allocation0]]
  $region57: #{tpu_custom_call.1} parent=0
    _
  %s6 = ssub.s32 1, %s4
  %s7 = scalar_select 0, %s6, %s4
  $region1: #{tpu_custom_call.1} parent=0
    #allocation2 [shape = 'u8[512]{0}', space=smem, size = 0x200, scoped, tag = 'input window, operand 0, single buffered']
    #allocation3 [shape = 's32[2]{0}', space=sflag, size = 0x8, scoped, tag = 'scoped memory for tpu_custom_call.1']
    #allocation4 [shape = 's32[2]{0}', space=sflag, size = 0x8, scoped, tag = 'scoped memory for tpu_custom_call.1']
    #allocation5 [shape = 's32[2]{0}', space=sflag, size = 0x8, scoped, tag = 'scoped memory for tpu_custom_call.1']
    #allocation6 [shape = 's32[2]{0}', space=sflag, size = 0x8, scoped, tag = 'scoped memory for tpu_custom_call.1']
    #allocation7 [shape = 'u8[512]{0}', space=smem, size = 0x200, scoped, tag = 'input window, operand 1, single buffered']
    #allocation8 [shape = 'u8[24576]{0}', space=vmem, size = 0x6000, scoped, tag = 'input window, operand 2']
    #allocation9 [shape = 'u8[24576]{0}', space=vmem, size = 0x6000, scoped, tag = 'output window, operand 0']
    %8 = vsyncpa [#allocation5], 0
    %9 = vsyncpa [#allocation6], 0
    %10 = vsyncpa [#allocation3], 0
    %s11 = scalar_lea.sflag [#allocation3], 1
    %12 = vsyncpa %s11, 0
    %13 = vsyncpa [#allocation4], 0
    %s14 = scalar_lea.sflag [#allocation4], 1
    %15 = vsyncpa %s14, 0
    loop: start=0, step=1, limit=4
    $region2: #{tpu_custom_call.1} parent=1 // loop_pre_header
      _
    $region3: #{tpu_custom_call.1} parent=1 // loop_header
      %s17 = sphi 0, %s21
      %p18 = scmp.ge.s32.totalorder %s17, 4
      %s24 = sphi 0, %s36
      %s25 = sphi 0, %s32
      %s26 = sphi 0, %s24
      %s27 = sphi 0, %s25
      %s28 = sphi 0, %s26
      %s29 = sphi 0, %s27
      %s37 = sphi 0, %s37
      %s39 = sphi 0, %s37
      %s40 = sphi 0, %s39
      %s54 = sphi 0, %s40
      %s58 = sphi 0, %s58
      %s60 = sphi 0, %s58
      %s61 = sphi 0, %s60
      %s75 = sphi 0, %s61
      %s83 = sphi 0, %s85
      %s86 = sphi 0, %s83
      %s87 = sphi 0, %s86
      %s103 = sphi 0, %s87
      %s111 = sphi 0, %s113
      %s114 = sphi 0, %s111
      %s115 = sphi 0, %s114
      %s131 = sphi 0, %s115
    $region4: #{tpu_custom_call.1} parent=1 // loop_header_branch
      %20 = sbr.rel (%p18) target = $region8
    $region5: #{tpu_custom_call.1} parent=1 // loop_body
      %s22 = ssub.s32 %s17, 1
      %s23 = ssub.s32 %s17, 2
      %s30 = sadd.s32 1, %s25
      %p31 = scmp.ge.s32.totalorder %s30, 1
      %s32 = scalar_select %p31, 0, %s30
      %s33 = sadd.s32 1, %s24
      %s34 = scalar_select %p31, %s33, %s24
      %p35 = scmp.ge.s32.totalorder %s34, 2
      %s36 = scalar_select %p35, 0, %s34
      %s38 = sadd.s32 %s37, 1
      %p41 = scmp.eq.s32.totalorder %s17, 1
      %p42 = scmp.ne.s32.totalorder %s37, %s39
      %p43 = scmp.eq.s32.totalorder %s17, 0
      %p44 = por %p42, %p43
      %p45 = scmp.ne.s32.totalorder %s37, %s39
      %p46 = scmp.eq.s32.totalorder %s22, 1
      %p47 = por %p45, %p46
      %p48 = scmp.ne.s32.totalorder %s39, %s40
      %p49 = scmp.eq.s32.totalorder %s22, 0
      %p50 = por %p48, %p49
      %p51 = scmp.ne.s32.totalorder %s39, %s40
      %p52 = scmp.eq.s32.totalorder %s23, 1
      %p53 = por %p51, %p52
      %p55 = scmp.ne.s32.totalorder %s40, %s54
      %p56 = scmp.eq.s32.totalorder %s23, 0
      %p57 = por %p55, %p56
      %s59 = sadd.s32 %s58, 1
      %p62 = scmp.eq.s32.totalorder %s17, 1
      %p63 = scmp.ne.s32.totalorder %s58, %s60
      %p64 = scmp.eq.s32.totalorder %s17, 0
      %p65 = por %p63, %p64
      %p66 = scmp.ne.s32.totalorder %s58, %s60
      %p67 = scmp.eq.s32.totalorder %s22, 1
      %p68 = por %p66, %p67
      %p69 = scmp.ne.s32.totalorder %s60, %s61
      %p70 = scmp.eq.s32.totalorder %s22, 0
      %p71 = por %p69, %p70
      %p72 = scmp.ne.s32.totalorder %s60, %s61
      %p73 = scmp.eq.s32.totalorder %s23, 1
      %p74 = por %p72, %p73
      %p76 = scmp.ne.s32.totalorder %s61, %s75
      %p77 = scmp.eq.s32.totalorder %s23, 0
      %p78 = por %p76, %p77
      %s79 = ssub.s32 %s24, %s36
      %s80 = ssub.s32 %s25, %s32
      %s81 = sor.u32 %s79, %s80
      %p82 = scmp.eq.s32.totalorder %s81, 0
      %s84 = sadd.s32 %s83, 1
      %s85 = scalar_select %p82, %s83, %s84
      %p88 = pneg %p82
      %p89 = scmp.eq.s32.totalorder %s17, 1
      %p90 = por %p88, %p89
      %p91 = scmp.ne.s32.totalorder %s83, %s86
      %p92 = scmp.eq.s32.totalorder %s17, 0
      %p93 = por %p91, %p92
      %p94 = scmp.ne.s32.totalorder %s83, %s86
      %p95 = scmp.eq.s32.totalorder %s22, 1
      %p96 = por %p94, %p95
      %p97 = scmp.ne.s32.totalorder %s86, %s87
      %p98 = scmp.eq.s32.totalorder %s22, 0
      %p99 = por %p97, %p98
      %p100 = scmp.ne.s32.totalorder %s86, %s87
      %p101 = scmp.eq.s32.totalorder %s23, 1
      %p102 = por %p100, %p101
      %p104 = scmp.ne.s32.totalorder %s87, %s103
      %p105 = scmp.eq.s32.totalorder %s23, 0
      %p106 = por %p104, %p105
      %s107 = ssub.s32 %s24, %s36
      %s108 = ssub.s32 %s25, %s32
      %s109 = sor.u32 %s107, %s108
      %p110 = scmp.eq.s32.totalorder %s109, 0
      %s112 = sadd.s32 %s111, 1
      %s113 = scalar_select %p110, %s111, %s112
      %p116 = pneg %p110
      %p117 = scmp.eq.s32.totalorder %s17, 1
      %p118 = por %p116, %p117
      %p119 = scmp.ne.s32.totalorder %s111, %s114
      %p120 = scmp.eq.s32.totalorder %s17, 0
      %p121 = por %p119, %p120
      %p122 = scmp.ne.s32.totalorder %s111, %s114
      %p123 = scmp.eq.s32.totalorder %s22, 1
      %p124 = por %p122, %p123
      %p125 = scmp.ne.s32.totalorder %s114, %s115
      %p126 = scmp.eq.s32.totalorder %s22, 0
      %p127 = por %p125, %p126
      %p128 = scmp.ne.s32.totalorder %s114, %s115
      %p129 = scmp.eq.s32.totalorder %s23, 1
      %p130 = por %p128, %p129
      %p132 = scmp.ne.s32.totalorder %s115, %s131
      %p133 = scmp.eq.s32.totalorder %s23, 0
      %p134 = por %p132, %p133
      %p135 = scmp.le.s32.totalorder 1, %s17
      %p136 = scmp.lt.s32.totalorder %s17, 3
      %p137 = pnand %p135, %p136
      %p138 = pneg %p137
      // Predicated region
      $region9: #{tpu_custom_call.1} parent=5 // pred_check
        _
      $region10: #{tpu_custom_call.1} parent=5 // pred_check_branch
        %140 = sbr.rel (%p137) target = $region12
      $region11: #{tpu_custom_call.1} parent=5 // pred_region
        %s141 = ssub.s32 %s17, 1
        // Predicated region
        $region13: #{tpu_custom_call.1} parent=11 // pred_check
          %p142 = pneg %p50
        $region14: #{tpu_custom_call.1} parent=11 // pred_check_branch
          %144 = sbr.rel (%p142) target = $region16
        $region15: #{tpu_custom_call.1} parent=11 // pred_region
          %s146 = ssub.s32 16, 16
          %147 = vsyncadd [#allocation5], %s146
          %150 = dma.hbm_to_smem %s0, 16, [#allocation2], [#allocation5]
        $region16: #{tpu_custom_call.1} parent=11 // pred_fallthru
          _
        // Predicated region
        $region17: #{tpu_custom_call.1} parent=11 // pred_check
          %p151 = pneg %p71
        $region18: #{tpu_custom_call.1} parent=11 // pred_check_branch
          %153 = sbr.rel (%p151) target = $region20
        $region19: #{tpu_custom_call.1} parent=11 // pred_region
          %s155 = ssub.s32 16, 16
          %156 = vsyncadd [#allocation6], %s155
          %s158 = sshll.u32 %s1, 4
          %s159 = int_to_ptr.vmem [resolvable:$true] %s158
          %161 = dma.vmem_to_smem %s159, 16, [#allocation7], [#allocation6]
        $region20: #{tpu_custom_call.1} parent=11 // pred_fallthru
          _
      $region12: #{tpu_custom_call.1} parent=5 // pred_fallthru
        _
      %p162 = scmp.lt.s32.totalorder %s17, 2
      // Predicated region
      $region21: #{tpu_custom_call.1} parent=5 // pred_check
        %p163 = pneg %p162
      $region22: #{tpu_custom_call.1} parent=5 // pred_check_branch
        %165 = sbr.rel (%p163) target = $region24
      $region23: #{tpu_custom_call.1} parent=5 // pred_region
        // Predicated region
        $region25: #{tpu_custom_call.1} parent=23 // pred_check
          %p166 = pneg %p93
        $region26: #{tpu_custom_call.1} parent=23 // pred_check_branch
          %168 = sbr.rel (%p166) target = $region28
        $region27: #{tpu_custom_call.1} parent=23 // pred_region
          %s169 = sand.u32 %s83, 1
          %s170 = scalar_lea.sflag [#allocation3], %s169
          %s171 = sand.u32 %s83, 1
          %s172 = smul.addr %s171, 24
          %s173 = scalar_lea.vmem [#allocation8], %s172
          %s175 = ssub.s32 384, 384
          %176 = vsyncadd %s170, %s175
          %s177 = smul.addr %s24, 3
          %s178 = sadd.s32 %s25, %s177
          %s179 = smul.addr %s178, 128
          %s180 = scalar_lea.hbm %s2, %s179
          %s181 = sshll.u32 %s173, 4
          %s182 = int_to_ptr.vmem [resolvable:$true] %s181
          %187 = dma.hbm_to_vmem [thread:$0]  %s180, 384, %s182, %s170, 128, 128, 8
        $region28: #{tpu_custom_call.1} parent=23 // pred_fallthru
          _
      $region24: #{tpu_custom_call.1} parent=5 // pred_fallthru
        _
      %p188 = scmp.le.s32.totalorder 1, %s17
      %p189 = scmp.lt.s32.totalorder %s17, 3
      %p190 = pnand %p188, %p189
      %p191 = pneg %p190
      // Predicated region
      $region29: #{tpu_custom_call.1} parent=5 // pred_check
        _
      $region30: #{tpu_custom_call.1} parent=5 // pred_check_branch
        %193 = sbr.rel (%p190) target = $region32
      $region31: #{tpu_custom_call.1} parent=5 // pred_region
        %s194 = ssub.s32 %s17, 1
        // Predicated region
        $region33: #{tpu_custom_call.1} parent=31 // pred_check
          %p195 = pneg %p50
        $region34: #{tpu_custom_call.1} parent=31 // pred_check_branch
          %197 = sbr.rel (%p195) target = $region36
        $region35: #{tpu_custom_call.1} parent=31 // pred_region
          %198 = dma.done [#allocation5], 16
        $region36: #{tpu_custom_call.1} parent=31 // pred_fallthru
          _
        // Predicated region
        $region37: #{tpu_custom_call.1} parent=31 // pred_check
          %p199 = pneg %p71
        $region38: #{tpu_custom_call.1} parent=31 // pred_check_branch
          %201 = sbr.rel (%p199) target = $region40
        $region39: #{tpu_custom_call.1} parent=31 // pred_region
          %202 = dma.done [#allocation6], 16
        $region40: #{tpu_custom_call.1} parent=31 // pred_fallthru
          _
        %s203 = sand.u32 %s86, 1
        %s204 = scalar_lea.sflag [#allocation3], %s203
        %s205 = sand.u32 %s86, 1
        %s206 = smul.addr %s205, 24
        %s207 = scalar_lea.vmem [#allocation8], %s206
        // Predicated region
        $region41: #{tpu_custom_call.1} parent=31 // pred_check
          %p208 = pneg %p99
        $region42: #{tpu_custom_call.1} parent=31 // pred_check_branch
          %210 = sbr.rel (%p208) target = $region44
        $region43: #{tpu_custom_call.1} parent=31 // pred_region
          %211 = dma.done %s204, 384
        $region44: #{tpu_custom_call.1} parent=31 // pred_fallthru
          _
        %212 = sfence
        %p213 = pneg %p50
        %p214 = pneg %p47
        %p215 = pneg %p71
        %p216 = pneg %p68
        %s217 = sand.u32 %s86, 1
        %s218 = scalar_lea.sflag [#allocation3], %s217
        %s219 = sand.u32 %s86, 1
        %s220 = smul.addr %s219, 24
        %s221 = scalar_lea.vmem [#allocation8], %s220
        %p222 = pneg %p99
        %p223 = pneg %p96
        %p224 = pneg %p127
        %p225 = pneg %p124
        %s226 = sand.u32 %s114, 1
        %s227 = scalar_lea.sflag [#allocation4], %s226
        %s228 = sand.u32 %s114, 1
        %s229 = smul.addr %s228, 24
        %s230 = scalar_lea.vmem [#allocation9], %s229
        %s231 = smul.u32 %s26, 9
        %s232 = smul.u32 %s26, 3
        %s233 = sld [smem:[#allocation2 + %s231]]
        %s234 = sadd.s32 %s231, 1
        %s235 = sld [smem:[#allocation2 + %s234]]
        %s236 = sadd.s32 %s231, 2
        %s237 = sld [smem:[#allocation2 + %s236]]
        %s238 = sadd.s32 %s231, 3
        %s239 = sld [smem:[#allocation2 + %s238]]
        %s240 = sadd.s32 %s231, 4
        %s241 = sld [smem:[#allocation2 + %s240]]
        %s242 = sadd.s32 %s231, 5
        %s243 = sld [smem:[#allocation2 + %s242]]
        %s244 = sadd.s32 %s231, 6
        %s245 = sld [smem:[#allocation2 + %s244]]
        %s246 = sadd.s32 %s231, 7
        %s247 = sld [smem:[#allocation2 + %s246]]
        %s248 = sadd.s32 %s231, 8
        %s249 = sld [smem:[#allocation2 + %s248]]
        %s250 = sld [smem:[#allocation7 + %s232]]
        %s251 = sadd.s32 %s232, 1
        %s252 = sld [smem:[#allocation7 + %s251]]
        %s253 = sadd.s32 %s232, 2
        %s254 = sld [smem:[#allocation7 + %s253]]
        %v255 = vld [vmem:[%s207] sm:$0xff]
        %s256 = scalar_lea.vmem %s207, 8 [#allocation8]
        %v257 = vld [vmem:[%s256] sm:$0xff]
        %s258 = scalar_lea.vmem %s207, 16 [#allocation8]
        %v259 = vld [vmem:[%s258] sm:$0xff]
        %v260 = vstv %s233
        %v261 = vmul.f32 %v260, %v255
        %v262 = vstv %s235
        %v263 = vmul.f32 %v262, %v257
        %v264 = vadd.f32 %v261, %v263
        %v265 = vstv %s237
        %v266 = vmul.f32 %v265, %v259
        %v267 = vadd.f32 %v264, %v266
        %v268 = vstv %s250
        %v269 = vadd.f32 %v267, %v268
        %270 = vst [vmem:[%s230] sm:$0xff] %v269
        %v271 = vstv %s239
        %v272 = vmul.f32 %v271, %v255
        %v273 = vstv %s241
        %v274 = vmul.f32 %v273, %v257
        %v275 = vadd.f32 %v272, %v274
        %v276 = vstv %s243
        %v277 = vmul.f32 %v276, %v259
        %v278 = vadd.f32 %v275, %v277
        %v279 = vstv %s252
        %v280 = vadd.f32 %v278, %v279
        %s281 = scalar_lea.vmem %s230, 8 [#allocation9]
        %282 = vst [vmem:[%s281] sm:$0xff] %v280
        %v283 = vstv %s245
        %v284 = vmul.f32 %v283, %v255
        %v285 = vstv %s247
        %v286 = vmul.f32 %v285, %v257
        %v287 = vadd.f32 %v284, %v286
        %v288 = vstv %s249
        %v289 = vmul.f32 %v288, %v259
        %v290 = vadd.f32 %v287, %v289
        %v291 = vstv %s254
        %v292 = vadd.f32 %v290, %v291
        %s293 = scalar_lea.vmem %s230, 16 [#allocation9]
        %294 = vst [vmem:[%s293] sm:$0xff] %v292
        %s295 = sand.u32 %s114, 1
        %s296 = scalar_lea.sflag [#allocation4], %s295
        %s297 = sand.u32 %s114, 1
        %s298 = smul.addr %s297, 24
        %s299 = scalar_lea.vmem [#allocation9], %s298
        // Predicated region
        $region45: #{tpu_custom_call.1} parent=31 // pred_check
          %p300 = pneg %p124
        $region46: #{tpu_custom_call.1} parent=31 // pred_check_branch
          %302 = sbr.rel (%p300) target = $region48
        $region47: #{tpu_custom_call.1} parent=31 // pred_region
          %s304 = ssub.s32 384, 384
          %305 = vsyncadd %s296, %s304
          %s306 = smul.addr %s26, 3
          %s307 = sadd.s32 %s27, %s306
          %s308 = smul.addr %s307, 128
          %s309 = scalar_lea.hbm %s3, %s308
          %s310 = sshll.u32 %s299, 4
          %s311 = int_to_ptr.vmem [resolvable:$true] %s310
          %316 = dma.vmem_to_hbm [thread:$0]  %s311, 384, %s309, %s296, 128, 128, 8
        $region48: #{tpu_custom_call.1} parent=31 // pred_fallthru
          _
      $region32: #{tpu_custom_call.1} parent=5 // pred_fallthru
        _
      %p317 = scmp.le.s32.totalorder 2, %s17
      // Predicated region
      $region49: #{tpu_custom_call.1} parent=5 // pred_check
        %p318 = pneg %p317
      $region50: #{tpu_custom_call.1} parent=5 // pred_check_branch
        %320 = sbr.rel (%p318) target = $region52
      $region51: #{tpu_custom_call.1} parent=5 // pred_region
        %s321 = ssub.s32 %s17, 2
        // Predicated region
        $region53: #{tpu_custom_call.1} parent=51 // pred_check
          %p322 = pneg %p130
        $region54: #{tpu_custom_call.1} parent=51 // pred_check_branch
          %324 = sbr.rel (%p322) target = $region56
        $region55: #{tpu_custom_call.1} parent=51 // pred_region
          %s325 = sand.u32 %s115, 1
          %s326 = scalar_lea.sflag [#allocation4], %s325
          %s327 = sand.u32 %s115, 1
          %s328 = smul.addr %s327, 24
          %s329 = scalar_lea.vmem [#allocation9], %s328
          %330 = dma.done %s326, 384
        $region56: #{tpu_custom_call.1} parent=51 // pred_fallthru
          _
      $region52: #{tpu_custom_call.1} parent=5 // pred_fallthru
        _
    $region6: #{tpu_custom_call.1} parent=1 // loop_footer
      %s21 = sadd.s32 1, %s17
    $region7: #{tpu_custom_call.1} parent=1 // loop_footer_branch
      %16 = sbr.rel target = $region3
    $region8: #{tpu_custom_call.1} parent=1 // loop_exit
      _
    %331 = vsyncpa [#allocation3], 1
    %s332 = scalar_lea.sflag [#allocation3], 1
    %333 = vsyncpa %s332, 1
    %334 = vsyncpa [#allocation4], 1
    %s335 = scalar_lea.sflag [#allocation4], 1
    %336 = vsyncpa %s335, 1
    %337 = vsyncpa [#allocation5], 1
    %s338 = scalar_lea.sflag [#allocation5], 1
    %339 = vsyncpa %s338, 1
    %340 = vsyncpa [#allocation6], 1
    %s341 = scalar_lea.sflag [#allocation6], 1
    %342 = vsyncpa %s341, 1

</llo_original>
